<compile_context>
chip_gen: v7x
topology: tpu7x:2x2x1
jax: 0.10.0
libtpu: 0.0.40
codegen_flags: <defaults>
</compile_context>

<pallas_src>
import functools

import numpy as np
import jax
import jax.numpy as jnp
from jax import lax
from jax.experimental import pallas as pl
from jax.experimental.pallas import tpu as pltpu


HIDDEN = 128          # hidden width of each MLP (fixed by the PyTorch module)
FUSED = 2 * HIDDEN    # 256: predictor + target stacked along the lane axis


def _round_up(x, m):
    return (x + m - 1) // m * m


@functools.lru_cache(maxsize=1)
def _chip_defaults():
    """(num_tensorcores, split_matmuls_at_128) derived from the local chip."""
    try:
        kind = jax.devices()[0].device_kind.lower()
    except Exception:
        kind = ""
    num_cores = 2 if "v7" in kind else 1          # v7x: 2 TensorCores / chip
    # 128-wide MXU generations: split the fused 256-wide block-diagonal
    # matmuls at the 128-lane boundary (zero blocks never reach the MXU).
    split_128 = any(v in kind for v in ("v2", "v3", "v4", "v5"))
    return num_cores, split_128


# ---------------------------------------------------------------------------
# Host-side parameter fusion.  Call ONCE per parameter set and reuse the slabs
# (the target net is frozen; repack only when the predictor is updated).
# ---------------------------------------------------------------------------
def fuse_rnd_params(predictor_params, target_params, input_dim, output_dim):
    """Pack both MLPs into one bf16 weight slab + one f32 bias slab.

    Returns (w_pack [d_pad + 2*FUSED, FUSED] bf16, b_pack [8, FUSED] f32, d_pad).
    """
    assert output_dim <= FUSED, "output_dim must fit in the 256-lane fused layer"
    pw1, pb1, pw2, pb2, pw3, pb3 = [jnp.asarray(p, jnp.float32) for p in predictor_params]
    tw1, tb1, tw2, tb2, tw3, tb3 = [jnp.asarray(p, jnp.float32) for p in target_params]

    d_pad = _round_up(input_dim, 8)

    # Layer 1: column-concat [pw1 | tw1], zero-padded to d_pad input rows.
    w1f = jnp.zeros((d_pad, FUSED), jnp.float32)
    w1f = w1f.at[:input_dim, :HIDDEN].set(pw1)
    w1f = w1f.at[:input_dim, HIDDEN:].set(tw1)
    b1f = jnp.concatenate([pb1.reshape(1, HIDDEN), tb1.reshape(1, HIDDEN)], axis=1)

    # Layer 2: block-diagonal (ReLU is elementwise, so fusion stays exact).
    w2f = jnp.zeros((FUSED, FUSED), jnp.float32)
    w2f = w2f.at[:HIDDEN, :HIDDEN].set(pw2)
    w2f = w2f.at[HIDDEN:, HIDDEN:].set(tw2)
    b2f = jnp.concatenate([pb2.reshape(1, HIDDEN), tb2.reshape(1, HIDDEN)], axis=1)

    # Layer 3 ("difference" layer): emits predict - target directly; columns
    # beyond output_dim are exact zeros (contribute 0 to the loss).
    w3d = jnp.zeros((FUSED, FUSED), jnp.float32)
    w3d = w3d.at[:HIDDEN, :output_dim].set(pw3)
    w3d = w3d.at[HIDDEN:, :output_dim].set(-tw3)
    b3d = jnp.zeros((1, FUSED), jnp.float32)
    b3d = b3d.at[0, :output_dim].set((pb3 - tb3).reshape(output_dim))

    # One weight slab; every row offset is a multiple of 8 (sublane aligned):
    #   rows [0, d_pad)              -> layer 1
    #   rows [d_pad, d_pad+256)      -> layer 2 (block diagonal)
    #   rows [d_pad+256, d_pad+512)  -> layer 3 (difference)
    w_pack = jnp.concatenate([w1f, w2f, w3d], axis=0).astype(jnp.bfloat16)

    # One bias slab, 8 sublanes (tile-aligned); rows 0/1/2 used, kept in f32.
    b_pack = jnp.zeros((8, FUSED), jnp.float32)
    b_pack = b_pack.at[0:1, :].set(b1f)
    b_pack = b_pack.at[1:2, :].set(b2f)
    b_pack = b_pack.at[2:3, :].set(b3d)
    return w_pack, b_pack, d_pad


# ---------------------------------------------------------------------------
# Kernel.
# ---------------------------------------------------------------------------
def _rnd_fused_kernel(obs_ref, w_ref, b_ref, out_ref, acc_ref, *,
                      d_pad, out_pad, tile_b, steps_per_core, batch,
                      needs_mask, split_128):
    i = pl.program_id(1)                         # batch-step within this core

    @pl.when(i == 0)
    def _init():
        acc_ref[...] = jnp.zeros_like(acc_ref)

    # ---- layer 1 (fused predictor | target) --------------------------------
    x = obs_ref[...].astype(jnp.bfloat16)        # bf16 MXU inputs, f32 acc
    z1 = jnp.dot(x, w_ref[0:d_pad, :],
                 preferred_element_type=jnp.float32) + b_ref[0:1, :]
    h1 = jnp.maximum(z1, 0.0)

    r2 = d_pad            # slab row offset of layer 2
    r3 = d_pad + FUSED    # slab row offset of layer 3 ("difference" layer)

    if split_128:
        # 128-wide MXU (v5e and older): keep predictor / target halves apart so
        # the zero blocks of the block-diagonal never reach the MXU.
        h1p = h1[:, :HIDDEN].astype(jnp.bfloat16)
        h1t = h1[:, HIDDEN:].astype(jnp.bfloat16)
        z2p = jnp.dot(h1p, w_ref[r2:r2 + HIDDEN, :HIDDEN],
                      preferred_element_type=jnp.float32) + b_ref[1:2, :HIDDEN]
        z2t = jnp.dot(h1t, w_ref[r2 + HIDDEN:r3, HIDDEN:],
                      preferred_element_type=jnp.float32) + b_ref[1:2, HIDDEN:]
        h2p = jnp.maximum(z2p, 0.0).astype(jnp.bfloat16)
        h2t = jnp.maximum(z2t, 0.0).astype(jnp.bfloat16)
        d = (jnp.dot(h2p, w_ref[r3:r3 + HIDDEN, :out_pad],
                     preferred_element_type=jnp.float32)
             + jnp.dot(h2t, w_ref[r3 + HIDDEN:r3 + FUSED, :out_pad],
                       preferred_element_type=jnp.float32)
             + b_ref[2:3, :out_pad])
    else:
        # 256-wide MXU (v6e / v7x): one full-width pass per layer.
        h1b = h1.astype(jnp.bfloat16)
        z2 = jnp.dot(h1b, w_ref[r2:r3, :],
                     preferred_element_type=jnp.float32) + b_ref[1:2, :]
        h2 = jnp.maximum(z2, 0.0).astype(jnp.bfloat16)
        d = jnp.dot(h2, w_ref[r3:r3 + FUSED, :out_pad],
                    preferred_element_type=jnp.float32) + b_ref[2:3, :out_pad]

    # d == (predict - target); lanes beyond output_dim are exact zeros.
    if needs_mask:
        # Zero rows past the true batch (last partial tile of a ragged batch).
        row0 = (pl.program_id(0) * steps_per_core + i) * tile_b
        rows = row0 + lax.broadcasted_iota(jnp.int32, (tile_b, out_pad), 0)
        d = jnp.where(rows < batch, d, 0.0)

    # Lane-vector partial sum (no cross-lane reduce / SMEM trip per step).
    acc_ref[0:1, :] += jnp.sum(d * d, axis=0, keepdims=True)

    @pl.when(i == steps_per_core - 1)
    def _finalize():
        out_ref[...] = acc_ref[...]              # this core's partial sums


# ---------------------------------------------------------------------------
# Wrapper (jitted).
# ---------------------------------------------------------------------------
def _rnd_loss_impl(obs, w_pack, b_pack, *, input_dim, output_dim, tile_b,
                   num_cores, split_128):
    obs = jnp.asarray(obs, jnp.float32)
    batch = obs.shape[0]
    d_pad = _round_up(input_dim, 8)              # keep obs lanes narrow (no 128 pad)
    out_pad = _round_up(output_dim, 128)         # 128 or 256

    if obs.shape[1] != d_pad:
        obs = jnp.pad(obs, ((0, 0), (0, d_pad - obs.shape[1])))

    tile = _round_up(min(tile_b, batch), 8)
    nsteps = pl.cdiv(batch, tile)
    cores = num_cores if (num_cores > 1 and nsteps % num_cores == 0) else 1
    steps_per_core = nsteps // cores
    needs_mask = (nsteps * tile != batch)
    n_elems = batch * output_dim                 # true F.mse_loss element count
    w_rows = d_pad + 2 * FUSED

    kernel = functools.partial(
        _rnd_fused_kernel, d_pad=d_pad, out_pad=out_pad, tile_b=tile,
        steps_per_core=steps_per_core, batch=batch, needs_mask=needs_mask,
        split_128=split_128)

    partial_sums = pl.pallas_call(
        kernel,
        out_shape=jax.ShapeDtypeStruct((cores * 8, out_pad), jnp.float32),
        grid_spec=pltpu.PrefetchScalarGridSpec(
            num_scalar_prefetch=0,
            grid=(cores, steps_per_core),
            in_specs=[
                pl.BlockSpec((tile, d_pad),
                             lambda c, i: (c * steps_per_core + i, 0)),  # obs tile
                pl.BlockSpec((w_rows, FUSED), lambda c, i: (0, 0)),      # weights (resident)
                pl.BlockSpec((8, FUSED), lambda c, i: (0, 0)),           # biases  (resident)
            ],
            out_specs=pl.BlockSpec((8, out_pad), lambda c, i: (c, 0)),   # per-core partials
            scratch_shapes=[pltpu.VMEM((8, out_pad), jnp.float32)],
        ),
        compiler_params=pltpu.CompilerParams(
            dimension_semantics=("parallel", "arbitrary")),
    )(obs, w_pack, b_pack)

    # Final cross-lane/core reduce + mean (divide by the TRUE element count).
    return jnp.sum(partial_sums) / jnp.float32(n_elems)


_rnd_loss_jit = jax.jit(
    _rnd_loss_impl,
    static_argnames=("input_dim", "output_dim", "tile_b", "num_cores",
                     "split_128"))


def rnd_forward_loss(obs, w_pack, b_pack, *, input_dim, output_dim,
                     tile_b=512):
    """F.mse_loss(predictor(obs), target(obs)) from the pre-packed slabs."""
    num_cores, split_128 = _chip_defaults()
    return _rnd_loss_jit(obs, w_pack, b_pack, input_dim=input_dim,
                         output_dim=output_dim, tile_b=tile_b,
                         num_cores=num_cores, split_128=split_128)


# ---------------------------------------------------------------------------
# Init + pure-JAX reference (mirrors the PyTorch module, f32 end to end).
# ---------------------------------------------------------------------------
def init_mlp_params(key, input_dim, output_dim):
    """Orthogonal(gain=sqrt(2)) weights, zero biases — mirrors the PyTorch init.

    Weights returned as [in, out]; biases as [1, out]."""
    k1, k2, k3 = jax.random.split(key, 3)
    ortho = jax.nn.initializers.orthogonal(scale=np.sqrt(2.0))
    w1 = ortho(k1, (input_dim, HIDDEN), jnp.float32)
    b1 = jnp.zeros((1, HIDDEN), jnp.float32)
    w2 = ortho(k2, (HIDDEN, HIDDEN), jnp.float32)
    b2 = jnp.zeros((1, HIDDEN), jnp.float32)
    w3 = ortho(k3, (HIDDEN, output_dim), jnp.float32)
    b3 = jnp.zeros((1, output_dim), jnp.float32)
    return (w1, b1, w2, b2, w3, b3)


def reference_forward_loss(obs, predictor_params, target_params):
    """Pure-JAX f32 reference of the PyTorch forward semantics."""
    def mlp(x, p):
        w1, b1, w2, b2, w3, b3 = p
        h = jnp.maximum(x @ w1 + b1, 0.0)
        h = jnp.maximum(h @ w2 + b2, 0.0)
        return h @ w3 + b3
    pf = mlp(obs, predictor_params)
    tf = mlp(obs, target_params)
    return jnp.mean((pf - tf) ** 2)


if __name__ == "__main__":
    key = jax.random.PRNGKey(0)
    k_obs, k_pred, k_tgt, k_big, k_rag = jax.random.split(key, 5)

    # state_shape = (4, 4) -> input_dim = 16; output_dim = 32; batch = 8
    batch, input_dim, output_dim = 8, 16, 32

    predictor_params = init_mlp_params(k_pred, input_dim, output_dim)
    target_params = init_mlp_params(k_tgt, input_dim, output_dim)

    # Pack the slabs ONCE (target is frozen) and reuse them every call.
    w_pack, b_pack, _ = fuse_rnd_params(
        predictor_params, target_params, input_dim, output_dim)

    def run(b, k):
        obs = jax.random.normal(k, (b, input_dim), dtype=jnp.float32)
        got = jax.block_until_ready(
            rnd_forward_loss(obs, w_pack, b_pack,
                             input_dim=input_dim, output_dim=output_dim))
        ref = reference_forward_loss(obs, predictor_params, target_params)
        # bf16 MXU inputs (f32 accumulation) vs the f32 reference.
        np.testing.assert_allclose(np.asarray(got), np.asarray(ref),
                                   rtol=5e-2, atol=1e-4)

    run(8, k_obs)       # tiny batch, single grid step
    run(256, k_big)     # larger single-step batch
    run(600, k_rag)     # multi-step grid + masked ragged last tile

    print("KERNEL_OK")
</pallas_src>

<mosaic_0001>
module attributes {stable_mosaic.version = 11 : i64} {
  func.func @_rnd_fused_kernel(%arg0: i32, %arg1: i32, %arg2: memref<8x16xf32, #tpu.memory_space<vmem>>, %arg3: memref<528x256xbf16, #tpu.memory_space<vmem>>, %arg4: memref<8x256xf32, #tpu.memory_space<vmem>>, %arg5: memref<8x128xf32, #tpu.memory_space<vmem>>, %arg6: memref<8x128xf32, #tpu.memory_space<vmem>>) attributes {dimension_semantics = [#tpu.dimension_semantics<parallel>, #tpu.dimension_semantics<arbitrary>], iteration_bounds = array<i64: 1, 1>, scalar_prefetch = 0 : i64, scratch_operands = 1 : i64, tpu.core_type = #tpu.core_type<tc>, window_params = [{transform_indices = @transform_0, window_bounds = array<i64: 8, 16>}, {pipeline_mode = #tpu.pipeline_mode<synchronous>, transform_indices = @transform_1, window_bounds = array<i64: 528, 256>}, {pipeline_mode = #tpu.pipeline_mode<synchronous>, transform_indices = @transform_2, window_bounds = array<i64: 8, 256>}, {transform_indices = @transform_3, window_bounds = array<i64: 8, 128>}]} {
    %c0_i32 = arith.constant 0 : i32
    %0 = arith.cmpi eq, %arg1, %c0_i32 : i32
    %1 = arith.extui %0 : i1 to i32
    %c0_i32_0 = arith.constant 0 : i32
    %2 = arith.cmpi ne, %1, %c0_i32_0 : i32
    scf.if %2 {
      %cst_21 = arith.constant 0.000000e+00 : f32
      %35 = vector.broadcast %cst_21 : f32 to vector<8x128xf32>
      %c0_22 = arith.constant 0 : index
      %c0_23 = arith.constant 0 : index
      %36 = vector.load %arg6[%c0_22, %c0_23] : memref<8x128xf32, #tpu.memory_space<vmem>>, vector<8x128xf32>
      tpu.vector_store %arg6[%c0_22, %c0_23], %35 {strides = array<i32>} : memref<8x128xf32, #tpu.memory_space<vmem>>, vector<8x128xf32>,
    } else {
    }
    %c0 = arith.constant 0 : index
    %c0_1 = arith.constant 0 : index
    %3 = vector.load %arg2[%c0, %c0_1] : memref<8x16xf32, #tpu.memory_space<vmem>>, vector<8x16xf32>
    %4 = arith.truncf %3 : vector<8x16xf32> to vector<8x16xbf16>
    %c0_2 = arith.constant 0 : index
    %c0_3 = arith.constant 0 : index
    %5 = vector.load %arg3[%c0_2, %c0_3] : memref<528x256xbf16, #tpu.memory_space<vmem>>, vector<16x256xbf16>
    %cst = arith.constant dense<0.000000e+00> : vector<8x256xf32>
    %6 = tpu.matmul %4, %5, %cst {dimension_numbers = #tpu.dot_dimension_numbers<[1], [0], [0], [1], [0, 0, 1, 1], [], []>} : vector<8x16xbf16>, vector<16x256xbf16>, vector<8x256xf32> -> vector<8x256xf32>
    %c0_4 = arith.constant 0 : index
    %c0_5 = arith.constant 0 : index
    %7 = vector.load %arg4[%c0_4, %c0_5] : memref<8x256xf32, #tpu.memory_space<vmem>>, vector<1x256xf32>
    %8 = vector.broadcast %7 : vector<1x256xf32> to vector<8x256xf32>
    %9 = arith.addf %6, %8 : vector<8x256xf32>
    %cst_6 = arith.constant 0.000000e+00 : f32
    %10 = vector.broadcast %cst_6 : f32 to vector<8x256xf32>
    %11 = arith.maximumf %9, %10 : vector<8x256xf32>
    %12 = arith.truncf %11 : vector<8x256xf32> to vector<8x256xbf16>
    %c16 = arith.constant 16 : index
    %c0_7 = arith.constant 0 : index
    %13 = vector.load %arg3[%c16, %c0_7] : memref<528x256xbf16, #tpu.memory_space<vmem>>, vector<256x256xbf16>
    %cst_8 = arith.constant dense<0.000000e+00> : vector<8x256xf32>
    %14 = tpu.matmul %12, %13, %cst_8 {dimension_numbers = #tpu.dot_dimension_numbers<[1], [0], [0], [1], [0, 0, 1, 1], [], []>} : vector<8x256xbf16>, vector<256x256xbf16>, vector<8x256xf32> -> vector<8x256xf32>
    %c1 = arith.constant 1 : index
    %c0_9 = arith.constant 0 : index
    %15 = vector.load %arg4[%c1, %c0_9] : memref<8x256xf32, #tpu.memory_space<vmem>>, vector<1x256xf32>
    %16 = vector.broadcast %15 : vector<1x256xf32> to vector<8x256xf32>
    %17 = arith.addf %14, %16 : vector<8x256xf32>
    %cst_10 = arith.constant 0.000000e+00 : f32
    %18 = vector.broadcast %cst_10 : f32 to vector<8x256xf32>
    %19 = arith.maximumf %17, %18 : vector<8x256xf32>
    %20 = arith.truncf %19 : vector<8x256xf32> to vector<8x256xbf16>
    %c272 = arith.constant 272 : index
    %c0_11 = arith.constant 0 : index
    %21 = vector.load %arg3[%c272, %c0_11] : memref<528x256xbf16, #tpu.memory_space<vmem>>, vector<256x128xbf16>
    %cst_12 = arith.constant dense<0.000000e+00> : vector<8x128xf32>
    %22 = tpu.matmul %20, %21, %cst_12 {dimension_numbers = #tpu.dot_dimension_numbers<[1], [0], [0], [1], [0, 0, 1, 1], [], []>} : vector<8x256xbf16>, vector<256x128xbf16>, vector<8x128xf32> -> vector<8x128xf32>
    %c2 = arith.constant 2 : index
    %c0_13 = arith.constant 0 : index
    %23 = vector.load %arg4[%c2, %c0_13] : memref<8x256xf32, #tpu.memory_space<vmem>>, vector<1x128xf32>
    %24 = vector.broadcast %23 : vector<1x128xf32> to vector<8x128xf32>
    %25 = arith.addf %22, %24 : vector<8x128xf32>
    %c0_14 = arith.constant 0 : index
    %c0_15 = arith.constant 0 : index
    %26 = vector.load %arg6[%c0_14, %c0_15] : memref<8x128xf32, #tpu.memory_space<vmem>>, vector<1x128xf32>
    %27 = arith.mulf %25, %25 : vector<8x128xf32>
    %cst_16 = arith.constant dense<0.000000e+00> : vector<128xf32>
    %28 = vector.multi_reduction <add>, %27, %cst_16 [0] : vector<8x128xf32> to vector<128xf32>
    %29 = vector.shape_cast %28 : vector<128xf32> to vector<1x128xf32>
    %30 = arith.addf %26, %29 : vector<1x128xf32>
    %c0_17 = arith.constant 0 : index
    %c0_18 = arith.constant 0 : index
    %31 = vector.load %arg6[%c0_17, %c0_18] : memref<8x128xf32, #tpu.memory_space<vmem>>, vector<1x128xf32>
    tpu.vector_store %arg6[%c0_17, %c0_18], %30 {strides = array<i32>} : memref<8x128xf32, #tpu.memory_space<vmem>>, vector<1x128xf32>,
    %c0_i32_19 = arith.constant 0 : i32
    %32 = arith.cmpi eq, %arg1, %c0_i32_19 : i32
    %33 = arith.extui %32 : i1 to i32
    %c0_i32_20 = arith.constant 0 : i32
    %34 = arith.cmpi ne, %33, %c0_i32_20 : i32
    scf.if %34 {
      %c0_21 = arith.constant 0 : index
      %c0_22 = arith.constant 0 : index
      %35 = vector.load %arg6[%c0_21, %c0_22] : memref<8x128xf32, #tpu.memory_space<vmem>>, vector<8x128xf32>
      %c0_23 = arith.constant 0 : index
      %c0_24 = arith.constant 0 : index
      %36 = vector.load %arg5[%c0_23, %c0_24] : memref<8x128xf32, #tpu.memory_space<vmem>>, vector<8x128xf32>
      tpu.vector_store %arg5[%c0_23, %c0_24], %35 {strides = array<i32>} : memref<8x128xf32, #tpu.memory_space<vmem>>, vector<8x128xf32>,
    } else {
    }
    return
  }
  func.func @transform_0(%arg0: i32, %arg1: i32) -> (i32, i32) {
    %c1_i32 = arith.constant 1 : i32
    %0 = arith.muli %arg0, %c1_i32 : i32
    %1 = arith.addi %0, %arg1 : i32
    %c0_i32 = arith.constant 0 : i32
    %c0_i32_0 = arith.constant 0 : i32
    return %1, %c0_i32 : i32, i32
  }
  func.func @transform_1(%arg0: i32, %arg1: i32) -> (i32, i32) {
    %c0_i32 = arith.constant 0 : i32
    %c0_i32_0 = arith.constant 0 : i32
    %c0_i32_1 = arith.constant 0 : i32
    return %c0_i32, %c0_i32_0 : i32, i32
  }
  func.func @transform_2(%arg0: i32, %arg1: i32) -> (i32, i32) {
    %c0_i32 = arith.constant 0 : i32
    %c0_i32_0 = arith.constant 0 : i32
    %c0_i32_1 = arith.constant 0 : i32
    return %c0_i32, %c0_i32_0 : i32, i32
  }
  func.func @transform_3(%arg0: i32, %arg1: i32) -> (i32, i32) {
    %c0_i32 = arith.constant 0 : i32
    %c0_i32_0 = arith.constant 0 : i32
    return %arg0, %c0_i32 : i32, i32
  }
}

</mosaic_0001>

<llo_original>
// kernel: _rnd_loss_impl.1
$region0: #{_rnd_loss_impl.1}
  #allocation0 [shape = 'u32[]', space=smem, size = 0x4, offset = 0x4, fixed_abs, tag = 'smem constant byte address 0x4 - core index']
  #allocation1 [shape = 'u32[144,128]{1,0:T(1,128)}', space=vmem, size = 0x12000, scoped, tag = 'internal scratch']
  #allocation2 [shape = 'f32[8,128]{1,0:T(8,128)}', space=vmem, size = 0x1000, scoped, tag = 'scratch operand']
  %s0 = inlined_call_operand.hbm [shape: f32[8,16], index: 0, kind: input, shape index: {}]
  %s1 = inlined_call_operand.hbm [shape: bf16[528,256], index: 1, kind: input, shape index: {}]
  %s2 = inlined_call_operand.hbm [shape: f32[8,256], index: 2, kind: input, shape index: {}]
  %s3 = inlined_call_operand.vmem [shape: f32[8,128], index: 3, kind: output, shape index: {}]
  %s4 = sld [smem:[#allocation0]]
  $region42: #{_rnd_loss_impl.1} parent=0
    _
  %s6 = ssub.s32 1, %s4
  %s7 = scalar_select 0, %s6, %s4
  $region1: #{_rnd_loss_impl.1} parent=0
    #allocation3 [shape = 'u8[4096]{0}', space=vmem, size = 0x1000, scoped, tag = 'input window, operand 0, single buffered']
    #allocation4 [shape = 's32[1]{0}', space=sflag, size = 0x4, scoped, tag = 'scoped memory for _rnd_loss_impl.1']
    #allocation5 [shape = 'u8[270336]{0}', space=vmem, size = 0x42000, scoped, tag = 'input window, operand 1, single buffered']
    #allocation6 [shape = 's32[1]{0}', space=sflag, size = 0x4, scoped, tag = 'scoped memory for _rnd_loss_impl.1']
    #allocation7 [shape = 'u8[8192]{0}', space=vmem, size = 0x2000, scoped, tag = 'input window, operand 2, single buffered']
    %8 = vsyncpa [#allocation4], 0
    %9 = vsyncpa [#allocation6], 0
    // Predicated region
    $region2: #{_rnd_loss_impl.1} parent=1 // pred_check
      _
    $region3: #{_rnd_loss_impl.1} parent=1 // pred_check_branch
      %11 = sbr.rel (0) target = $region5
    $region4: #{_rnd_loss_impl.1} parent=1 // pred_region
      %s12 = sadd.s32 0, 0
      %s14 = ssub.s32 128, 128
      %15 = vsyncadd [#allocation4], %s14
      %s16 = smul.addr %s12, 128
      %s17 = scalar_lea.hbm %s0, %s16
      %s19 = sshll.u32 [#allocation3], 4
      %s20 = int_to_ptr.vmem [resolvable:$true] %s19
      %22 = dma.hbm_to_vmem [thread:$0]  %s17, 128, %s20, [#allocation4]
    $region5: #{_rnd_loss_impl.1} parent=1 // pred_fallthru
      _
    // Predicated region
    $region6: #{_rnd_loss_impl.1} parent=1 // pred_check
      _
    $region7: #{_rnd_loss_impl.1} parent=1 // pred_check_branch
      %24 = sbr.rel (0) target = $region9
    $region8: #{_rnd_loss_impl.1} parent=1 // pred_region
      %s26 = ssub.s32 8448, 8448
      %27 = vsyncadd [#allocation6], %s26
      %s28 = sshll.u32 [#allocation5], 4
      %s29 = int_to_ptr.vmem [resolvable:$true] %s28
      %34 = dma.hbm_to_vmem [thread:$0]  %s1, 8448, %s29, [#allocation6], 128, 128, 8
    $region9: #{_rnd_loss_impl.1} parent=1 // pred_fallthru
      _
    // Predicated region
    $region10: #{_rnd_loss_impl.1} parent=1 // pred_check
      _
    $region11: #{_rnd_loss_impl.1} parent=1 // pred_check_branch
      %36 = sbr.rel (0) target = $region13
    $region12: #{_rnd_loss_impl.1} parent=1 // pred_region
      %s38 = ssub.s32 256, 256
      %39 = vsyncadd [#allocation6], %s38
      %s41 = sshll.u32 [#allocation7], 4
      %s42 = int_to_ptr.vmem [resolvable:$true] %s41
      %44 = dma.hbm_to_vmem [thread:$0]  %s2, 256, %s42, [#allocation6]
    $region13: #{_rnd_loss_impl.1} parent=1 // pred_fallthru
      _
    // Predicated region
    $region14: #{_rnd_loss_impl.1} parent=1 // pred_check
      _
    $region15: #{_rnd_loss_impl.1} parent=1 // pred_check_branch
      %46 = sbr.rel (0) target = $region17
    $region16: #{_rnd_loss_impl.1} parent=1 // pred_region
      %47 = dma.done [#allocation4], 128
    $region17: #{_rnd_loss_impl.1} parent=1 // pred_fallthru
      _
    // Predicated region
    $region18: #{_rnd_loss_impl.1} parent=1 // pred_check
      _
    $region19: #{_rnd_loss_impl.1} parent=1 // pred_check_branch
      %49 = sbr.rel (0) target = $region21
    $region20: #{_rnd_loss_impl.1} parent=1 // pred_region
      %50 = dma.done [#allocation6], 8448
    $region21: #{_rnd_loss_impl.1} parent=1 // pred_fallthru
      _
    // Predicated region
    $region22: #{_rnd_loss_impl.1} parent=1 // pred_check
      _
    $region23: #{_rnd_loss_impl.1} parent=1 // pred_check_branch
      %52 = sbr.rel (0) target = $region25
    $region24: #{_rnd_loss_impl.1} parent=1 // pred_region
      %53 = dma.done [#allocation6], 256
    $region25: #{_rnd_loss_impl.1} parent=1 // pred_fallthru
      _
    %s54 = sadd.s32 0, 0
    %p56 = scmp.eq.s32.totalorder 0, 0
    // Predicated region
    $region26: #{_rnd_loss_impl.1} parent=1 // pred_check
      %p57 = pneg %p56
    $region27: #{_rnd_loss_impl.1} parent=1 // pred_check_branch
      %59 = sbr.rel (%p57) target = $region29
    $region28: #{_rnd_loss_impl.1} parent=1 // pred_region
      %60 = vst [vmem:[#allocation2] sm:$0xff] 0.0
    $region29: #{_rnd_loss_impl.1} parent=1 // pred_fallthru
      _
    %v61 = vld [vmem:[#allocation3] sm:$0xff]
    %v62 = vpack.c.bf16 %v61, %v61
    %v63 = vld [vmem:[#allocation5] sm:$0xff]
    %v64 = vld [vmem:[#allocation5 + $0x8] sm:$0xff]
    %v65 = vld [vmem:[#allocation7] ss:$8 sm:$0x3]
    %v67 = vlaneseq
    %v68 = vshrl.u32 %v67, 7
    %v69 = vsub.s32 0, %v68
    %v70 = vrot.slane %v65, %v69
    %v71 = vlaneseq
    %v72 = vshrl.u32 %v71, 7
    %v73 = vsub.s32 1, %v72
    %v74 = vrot.slane %v65, %v73
    %v79 = vunpack.c.l.b16 %v63
    %v80 = vunpack.c.h.b16 %v63
    %v81 = vunpack.c.l.b16 %v64
    %v82 = vunpack.c.h.b16 %v64
    %v83 = vpack.c.b16 %v81, %v79
    %v84 = vpack.c.b16 %v82, %v80
    %vm87 = vcmask 130048
    %v89 = vsel %vm87, %v62, 0
    %91 = vmatprep.subr.bf16.mxu0 %v84
    %92 = vmatpush1.bf16.msra.mxu0 %v83
    %93 = vmatprep.subr.bf16.mxu0 0
    %94 = vmatpush1.bf16.msra.mxu0 0
    %95 = vmatprep.subr.bf16.mxu0 0
    %96 = vmatpush1.bf16.msra.mxu0 0
    %97 = vmatprep.subr.bf16.mxu0 0
    %98 = vmatpush1.bf16.msra.mxu0 0
    %99 = vmatprep.subr.bf16.mxu0 0
    %100 = vmatpush1.bf16.msra.mxu0 0
    %101 = vmatprep.subr.bf16.mxu0 0
    %102 = vmatpush1.bf16.msra.mxu0 0
    %103 = vmatprep.subr.bf16.mxu0 0
    %104 = vmatpush1.bf16.msra.mxu0 0
    %105 = vmatprep.subr.bf16.mxu0 0
    %106 = vmatpush1.bf16.msra.mxu0 0
    %107 = vmatprep.subr.bf16.mxu0 0
    %108 = vmatpush1.bf16.msra.mxu0 0
    %109 = vmatprep.subr.bf16.mxu0 0
    %110 = vmatpush1.bf16.msra.mxu0 0
    %111 = vmatprep.subr.bf16.mxu0 0
    %112 = vmatpush1.bf16.msra.mxu0 0
    %113 = vmatprep.subr.bf16.mxu0 0
    %114 = vmatpush1.bf16.msra.mxu0 0
    %115 = vmatprep.subr.bf16.mxu0 0
    %116 = vmatpush1.bf16.msra.mxu0 0
    %117 = vmatprep.subr.bf16.mxu0 0
    %118 = vmatpush1.bf16.msra.mxu0 0
    %119 = vmatprep.subr.bf16.mxu0 0
    %120 = vmatpush1.bf16.msra.mxu0 0
    %121 = vmatprep.subr.bf16.mxu0 0
    %122 = vmatpush1.bf16.msra.mxu0 0
    %123 = vmatprep.mubr.bf16.mxu0 0
    %124 = vmatmul.mubr.bf16.gmra.mrb[0].mxu0 %v89
    %v125 = vpop.f32.mrb[0].mxu0
    %v126 = vadd.f32 %v70, %v125
    %v127 = vpop.f32.mrb[0].mxu0
    %v128 = vadd.f32 %v74, %v127
    %v129 = vpop.f32.mrb[0].mxu0
    %v130 = vpop.f32.mrb[0].mxu0
    %131 = vdwg.mxu0
    %v132 = vmax.f32 %v126, 0.0
    %v133 = vmax.f32 %v128, 0.0
    %v134 = vpack.c.bf16 %v132, %v132
    %v135 = vpack.c.bf16 %v133, %v133
    %v136 = vld [vmem:[#allocation5 + $0x10] sm:$0xff]
    %v137 = vld [vmem:[#allocation5 + $0x18] sm:$0xff]
    %v138 = vld [vmem:[#allocation5 + $0x20] sm:$0xff]
    %v139 = vld [vmem:[#allocation5 + $0x28] sm:$0xff]
    %v140 = vld [vmem:[#allocation5 + $0x30] sm:$0xff]
    %v141 = vld [vmem:[#allocation5 + $0x38] sm:$0xff]
    %v142 = vld [vmem:[#allocation5 + $0x40] sm:$0xff]
    %v143 = vld [vmem:[#allocation5 + $0x48] sm:$0xff]
    %v144 = vld [vmem:[#allocation5 + $0x50] sm:$0xff]
    %v145 = vld [vmem:[#allocation5 + $0x58] sm:$0xff]
    %v146 = vld [vmem:[#allocation5 + $0x60] sm:$0xff]
    %v147 = vld [vmem:[#allocation5 + $0x68] sm:$0xff]
    %v148 = vld [vmem:[#allocation5 + $0x70] sm:$0xff]
    %v149 = vld [vmem:[#allocation5 + $0x78] sm:$0xff]
    %v150 = vld [vmem:[#allocation5 + $0x80] sm:$0xff]
    %v151 = vld [vmem:[#allocation5 + $0x88] sm:$0xff]
    %v152 = vld [vmem:[#allocation5 + $0x90] sm:$0xff]
    %v153 = vld [vmem:[#allocation5 + $0x98] sm:$0xff]
    %v154 = vld [vmem:[#allocation5 + $0xa0] sm:$0xff]
    %v155 = vld [vmem:[#allocation5 + $0xa8] sm:$0xff]
    %v156 = vld [vmem:[#allocation5 + $0xb0] sm:$0xff]
    %v157 = vld [vmem:[#allocation5 + $0xb8] sm:$0xff]
    %v158 = vld [vmem:[#allocation5 + $0xc0] sm:$0xff]
    %v159 = vld [vmem:[#allocation5 + $0xc8] sm:$0xff]
    %v160 = vld [vmem:[#allocation5 + $0xd0] sm:$0xff]
    %v161 = vld [vmem:[#allocation5 + $0xd8] sm:$0xff]
    %v162 = vld [vmem:[#allocation5 + $0xe0] sm:$0xff]
    %v163 = vld [vmem:[#allocation5 + $0xe8] sm:$0xff]
    %v164 = vld [vmem:[#allocation5 + $0xf0] sm:$0xff]
    %v165 = vld [vmem:[#allocation5 + $0xf8] sm:$0xff]
    %v166 = vld [vmem:[#allocation5 + $0x100] sm:$0xff]
    %v167 = vld [vmem:[#allocation5 + $0x108] sm:$0xff]
    %s168 = scalar_lea.vmem [#allocation7], 1
    %v169 = vld [vmem:[%s168] ss:$8 sm:$0x3]
    %v171 = vlaneseq
    %v172 = vshrl.u32 %v171, 7
    %v173 = vsub.s32 0, %v172
    %v174 = vrot.slane %v169, %v173
    %v175 = vlaneseq
    %v176 = vshrl.u32 %v175, 7
    %v177 = vsub.s32 1, %v176
    %v178 = vrot.slane %v169, %v177
    %v213 = vunpack.c.l.b16 %v136
    %v214 = vunpack.c.h.b16 %v136
    %v215 = vunpack.c.l.b16 %v137
    %v216 = vunpack.c.h.b16 %v137
    %v217 = vunpack.c.l.b16 %v138
    %v218 = vunpack.c.h.b16 %v138
    %v219 = vunpack.c.l.b16 %v139
    %v220 = vunpack.c.h.b16 %v139
    %v221 = vunpack.c.l.b16 %v140
    %v222 = vunpack.c.h.b16 %v140
    %v223 = vunpack.c.l.b16 %v141
    %v224 = vunpack.c.h.b16 %v141
    %v225 = vunpack.c.l.b16 %v142
    %v226 = vunpack.c.h.b16 %v142
    %v227 = vunpack.c.l.b16 %v143
    %v228 = vunpack.c.h.b16 %v143
    %v229 = vunpack.c.l.b16 %v144
    %v230 = vunpack.c.h.b16 %v144
    %v231 = vunpack.c.l.b16 %v145
    %v232 = vunpack.c.h.b16 %v145
    %v233 = vunpack.c.l.b16 %v146
    %v234 = vunpack.c.h.b16 %v146
    %v235 = vunpack.c.l.b16 %v147
    %v236 = vunpack.c.h.b16 %v147
    %v237 = vunpack.c.l.b16 %v148
    %v238 = vunpack.c.h.b16 %v148
    %v239 = vunpack.c.l.b16 %v149
    %v240 = vunpack.c.h.b16 %v149
    %v241 = vunpack.c.l.b16 %v150
    %v242 = vunpack.c.h.b16 %v150
    %v243 = vunpack.c.l.b16 %v151
    %v244 = vunpack.c.h.b16 %v151
    %v245 = vunpack.c.l.b16 %v152
    %v246 = vunpack.c.h.b16 %v152
    %v247 = vunpack.c.l.b16 %v153
    %v248 = vunpack.c.h.b16 %v153
    %v249 = vunpack.c.l.b16 %v154
    %v250 = vunpack.c.h.b16 %v154
    %v251 = vunpack.c.l.b16 %v155
    %v252 = vunpack.c.h.b16 %v155
    %v253 = vunpack.c.l.b16 %v156
    %v254 = vunpack.c.h.b16 %v156
    %v255 = vunpack.c.l.b16 %v157
    %v256 = vunpack.c.h.b16 %v157
    %v257 = vunpack.c.l.b16 %v158
    %v258 = vunpack.c.h.b16 %v158
    %v259 = vunpack.c.l.b16 %v159
    %v260 = vunpack.c.h.b16 %v159
    %v261 = vunpack.c.l.b16 %v160
    %v262 = vunpack.c.h.b16 %v160
    %v263 = vunpack.c.l.b16 %v161
    %v264 = vunpack.c.h.b16 %v161
    %v265 = vunpack.c.l.b16 %v162
    %v266 = vunpack.c.h.b16 %v162
    %v267 = vunpack.c.l.b16 %v163
    %v268 = vunpack.c.h.b16 %v163
    %v269 = vunpack.c.l.b16 %v164
    %v270 = vunpack.c.h.b16 %v164
    %v271 = vunpack.c.l.b16 %v165
    %v272 = vunpack.c.h.b16 %v165
    %v273 = vunpack.c.l.b16 %v166
    %v274 = vunpack.c.h.b16 %v166
    %v275 = vunpack.c.l.b16 %v167
    %v276 = vunpack.c.h.b16 %v167
    %v277 = vpack.c.b16 %v215, %v213
    %v278 = vpack.c.b16 %v216, %v214
    %v279 = vpack.c.b16 %v219, %v217
    %v280 = vpack.c.b16 %v220, %v218
    %v281 = vpack.c.b16 %v223, %v221
    %v282 = vpack.c.b16 %v224, %v222
    %v283 = vpack.c.b16 %v227, %v225
    %v284 = vpack.c.b16 %v228, %v226
    %v285 = vpack.c.b16 %v231, %v229
    %v286 = vpack.c.b16 %v232, %v230
    %v287 = vpack.c.b16 %v235, %v233
    %v288 = vpack.c.b16 %v236, %v234
    %v289 = vpack.c.b16 %v239, %v237
    %v290 = vpack.c.b16 %v240, %v238
    %v291 = vpack.c.b16 %v243, %v241
    %v292 = vpack.c.b16 %v244, %v242
    %v293 = vpack.c.b16 %v247, %v245
    %v294 = vpack.c.b16 %v248, %v246
    %v295 = vpack.c.b16 %v251, %v249
    %v296 = vpack.c.b16 %v252, %v250
    %v297 = vpack.c.b16 %v255, %v253
    %v298 = vpack.c.b16 %v256, %v254
    %v299 = vpack.c.b16 %v259, %v257
    %v300 = vpack.c.b16 %v260, %v258
    %v301 = vpack.c.b16 %v263, %v261
    %v302 = vpack.c.b16 %v264, %v262
    %v303 = vpack.c.b16 %v267, %v265
    %v304 = vpack.c.b16 %v268, %v266
    %v305 = vpack.c.b16 %v271, %v269
    %v306 = vpack.c.b16 %v272, %v270
    %v307 = vpack.c.b16 %v275, %v273
    %v308 = vpack.c.b16 %v276, %v274
    %341 = vmatprep.subr.bf16.mxu0 %v278
    %342 = vmatpush1.bf16.msra.mxu0 %v277
    %343 = vmatprep.subr.bf16.mxu0 %v280
    %344 = vmatpush1.bf16.msra.mxu0 %v279
    %345 = vmatprep.subr.bf16.mxu0 %v282
    %346 = vmatpush1.bf16.msra.mxu0 %v281
    %347 = vmatprep.subr.bf16.mxu0 %v284
    %348 = vmatpush1.bf16.msra.mxu0 %v283
    %349 = vmatprep.subr.bf16.mxu0 %v286
    %350 = vmatpush1.bf16.msra.mxu0 %v285
    %351 = vmatprep.subr.bf16.mxu0 %v288
    %352 = vmatpush1.bf16.msra.mxu0 %v287
    %353 = vmatprep.subr.bf16.mxu0 %v290
    %354 = vmatpush1.bf16.msra.mxu0 %v289
    %355 = vmatprep.subr.bf16.mxu0 %v292
    %356 = vmatpush1.bf16.msra.mxu0 %v291
    %357 = vmatprep.subr.bf16.mxu0 %v294
    %358 = vmatpush1.bf16.msra.mxu0 %v293
    %359 = vmatprep.subr.bf16.mxu0 %v296
    %360 = vmatpush1.bf16.msra.mxu0 %v295
    %361 = vmatprep.subr.bf16.mxu0 %v298
    %362 = vmatpush1.bf16.msra.mxu0 %v297
    %363 = vmatprep.subr.bf16.mxu0 %v300
    %364 = vmatpush1.bf16.msra.mxu0 %v299
    %365 = vmatprep.subr.bf16.mxu0 %v302
    %366 = vmatpush1.bf16.msra.mxu0 %v301
    %367 = vmatprep.subr.bf16.mxu0 %v304
    %368 = vmatpush1.bf16.msra.mxu0 %v303
    %369 = vmatprep.subr.bf16.mxu0 %v306
    %370 = vmatpush1.bf16.msra.mxu0 %v305
    %371 = vmatprep.subr.bf16.mxu0 %v308
    %372 = vmatpush1.bf16.msra.mxu0 %v307
    %373 = vmatprep.mubr.bf16.mxu0 %v135
    %374 = vmatmul.mubr.bf16.gmra.mrb[0].mxu0 %v134
    %v375 = vpop.f32.mrb[0].mxu0
    %v376 = vadd.f32 %v174, %v375
    %v377 = vpop.f32.mrb[0].mxu0
    %v378 = vadd.f32 %v178, %v377
    %v379 = vpop.f32.mrb[0].mxu0
    %v380 = vpop.f32.mrb[0].mxu0
    %381 = vdwg.mxu0
    %v382 = vmax.f32 %v376, 0.0
    %v383 = vmax.f32 %v378, 0.0
    %v384 = vpack.c.bf16 %v382, %v382
    %v385 = vpack.c.bf16 %v383, %v383
    %v386 = vld [vmem:[#allocation5 + $0x110] sm:$0xf]
    %v387 = vld [vmem:[#allocation5 + $0x118] sm:$0xf]
    %v388 = vld [vmem:[#allocation5 + $0x120] sm:$0xf]
    %v389 = vld [vmem:[#allocation5 + $0x128] sm:$0xf]
    %v390 = vld [vmem:[#allocation5 + $0x130] sm:$0xf]
    %v391 = vld [vmem:[#allocation5 + $0x138] sm:$0xf]
    %v392 = vld [vmem:[#allocation5 + $0x140] sm:$0xf]
    %v393 = vld [vmem:[#allocation5 + $0x148] sm:$0xf]
    %v394 = vld [vmem:[#allocation5 + $0x150] sm:$0xf]
    %v395 = vld [vmem:[#allocation5 + $0x158] sm:$0xf]
    %v396 = vld [vmem:[#allocation5 + $0x160] sm:$0xf]
    %v397 = vld [vmem:[#allocation5 + $0x168] sm:$0xf]
    %v398 = vld [vmem:[#allocation5 + $0x170] sm:$0xf]
    %v399 = vld [vmem:[#allocation5 + $0x178] sm:$0xf]
    %v400 = vld [vmem:[#allocation5 + $0x180] sm:$0xf]
    %v401 = vld [vmem:[#allocation5 + $0x188] sm:$0xf]
    %v402 = vld [vmem:[#allocation5 + $0x190] sm:$0xf]
    %v403 = vld [vmem:[#allocation5 + $0x198] sm:$0xf]
    %v404 = vld [vmem:[#allocation5 + $0x1a0] sm:$0xf]
    %v405 = vld [vmem:[#allocation5 + $0x1a8] sm:$0xf]
    %v406 = vld [vmem:[#allocation5 + $0x1b0] sm:$0xf]
    %v407 = vld [vmem:[#allocation5 + $0x1b8] sm:$0xf]
    %v408 = vld [vmem:[#allocation5 + $0x1c0] sm:$0xf]
    %v409 = vld [vmem:[#allocation5 + $0x1c8] sm:$0xf]
    %v410 = vld [vmem:[#allocation5 + $0x1d0] sm:$0xf]
    %v411 = vld [vmem:[#allocation5 + $0x1d8] sm:$0xf]
    %v412 = vld [vmem:[#allocation5 + $0x1e0] sm:$0xf]
    %v413 = vld [vmem:[#allocation5 + $0x1e8] sm:$0xf]
    %v414 = vld [vmem:[#allocation5 + $0x1f0] sm:$0xf]
    %v415 = vld [vmem:[#allocation5 + $0x1f8] sm:$0xf]
    %v416 = vld [vmem:[#allocation5 + $0x200] sm:$0xf]
    %v417 = vld [vmem:[#allocation5 + $0x208] sm:$0xf]
    %v418 = vld [vmem:[#allocation7 + $0x2] ss:$0 sm:$0xff]
    %v451 = vunpack.c.l.b16 %v386
    %v452 = vunpack.c.l.b16 %v387
    %v453 = vunpack.c.l.b16 %v388
    %v454 = vunpack.c.l.b16 %v389
    %v455 = vunpack.c.l.b16 %v390
    %v456 = vunpack.c.l.b16 %v391
    %v457 = vunpack.c.l.b16 %v392
    %v458 = vunpack.c.l.b16 %v393
    %v459 = vunpack.c.l.b16 %v394
    %v460 = vunpack.c.l.b16 %v395
    %v461 = vunpack.c.l.b16 %v396
    %v462 = vunpack.c.l.b16 %v397
    %v463 = vunpack.c.l.b16 %v398
    %v464 = vunpack.c.l.b16 %v399
    %v465 = vunpack.c.l.b16 %v400
    %v466 = vunpack.c.l.b16 %v401
    %v467 = vunpack.c.l.b16 %v402
    %v468 = vunpack.c.l.b16 %v403
    %v469 = vunpack.c.l.b16 %v404
    %v470 = vunpack.c.l.b16 %v405
    %v471 = vunpack.c.l.b16 %v406
    %v472 = vunpack.c.l.b16 %v407
    %v473 = vunpack.c.l.b16 %v408
    %v474 = vunpack.c.l.b16 %v409
    %v475 = vunpack.c.l.b16 %v410
    %v476 = vunpack.c.l.b16 %v411
    %v477 = vunpack.c.l.b16 %v412
    %v478 = vunpack.c.l.b16 %v413
    %v479 = vunpack.c.l.b16 %v414
    %v480 = vunpack.c.l.b16 %v415
    %v481 = vunpack.c.l.b16 %v416
    %v482 = vunpack.c.l.b16 %v417
    %v483 = vpack.c.b16 %v452, %v451
    %v484 = vpack.c.b16 %v454, %v453
    %v485 = vpack.c.b16 %v456, %v455
    %v486 = vpack.c.b16 %v458, %v457
    %v487 = vpack.c.b16 %v460, %v459
    %v488 = vpack.c.b16 %v462, %v461
    %v489 = vpack.c.b16 %v464, %v463
    %v490 = vpack.c.b16 %v466, %v465
    %v491 = vpack.c.b16 %v468, %v467
    %v492 = vpack.c.b16 %v470, %v469
    %v493 = vpack.c.b16 %v472, %v471
    %v494 = vpack.c.b16 %v474, %v473
    %v495 = vpack.c.b16 %v476, %v475
    %v496 = vpack.c.b16 %v478, %v477
    %v497 = vpack.c.b16 %v480, %v479
    %v498 = vpack.c.b16 %v482, %v481
    %515 = vmatprep.subr.bf16.mxu0 0
    %516 = vmatpush1.bf16.msra.mxu0 %v483
    %517 = vmatprep.subr.bf16.mxu0 0
    %518 = vmatpush1.bf16.msra.mxu0 %v484
    %519 = vmatprep.subr.bf16.mxu0 0
    %520 = vmatpush1.bf16.msra.mxu0 %v485
    %521 = vmatprep.subr.bf16.mxu0 0
    %522 = vmatpush1.bf16.msra.mxu0 %v486
    %523 = vmatprep.subr.bf16.mxu0 0
    %524 = vmatpush1.bf16.msra.mxu0 %v487
    %525 = vmatprep.subr.bf16.mxu0 0
    %526 = vmatpush1.bf16.msra.mxu0 %v488
    %527 = vmatprep.subr.bf16.mxu0 0
    %528 = vmatpush1.bf16.msra.mxu0 %v489
    %529 = vmatprep.subr.bf16.mxu0 0
    %530 = vmatpush1.bf16.msra.mxu0 %v490
    %531 = vmatprep.subr.bf16.mxu0 0
    %532 = vmatpush1.bf16.msra.mxu0 %v491
    %533 = vmatprep.subr.bf16.mxu0 0
    %534 = vmatpush1.bf16.msra.mxu0 %v492
    %535 = vmatprep.subr.bf16.mxu0 0
    %536 = vmatpush1.bf16.msra.mxu0 %v493
    %537 = vmatprep.subr.bf16.mxu0 0
    %538 = vmatpush1.bf16.msra.mxu0 %v494
    %539 = vmatprep.subr.bf16.mxu0 0
    %540 = vmatpush1.bf16.msra.mxu0 %v495
    %541 = vmatprep.subr.bf16.mxu0 0
    %542 = vmatpush1.bf16.msra.mxu0 %v496
    %543 = vmatprep.subr.bf16.mxu0 0
    %544 = vmatpush1.bf16.msra.mxu0 %v497
    %545 = vmatprep.subr.bf16.mxu0 0
    %546 = vmatpush1.bf16.msra.mxu0 %v498
    %547 = vmatprep.mubr.bf16.mxu0 %v385
    %548 = vmatmul.mubr.bf16.gmra.mrb[0].mxu0 %v384
    %v549 = vpop.f32.mrb[0].mxu0
    %v550 = vadd.f32 %v418, %v549
    %v551 = vpop.f32.mrb[0].mxu0
    %v552 = vpop.f32.mrb[0].mxu0
    %v553 = vpop.f32.mrb[0].mxu0
    %554 = vdwg.mxu0
    %v555 = vld [vmem:[#allocation2] sm:$0x1]
    %v556 = vmul.f32 %v550, %v550
    %v557 = vrot.slane %v556, 4
    %v558 = vadd.f32 %v556, %v557
    %v559 = vrot.slane %v558, 2
    %v560 = vadd.f32 %v558, %v559
    %v561 = vrot.slane %v560, 1
    %v562 = vadd.f32 %v560, %v561
    %v563 = vadd.f32 %v555, %v562
    %564 = vst [vmem:[#allocation2] sm:$0x1] %v563
    // Predicated region
    $region30: #{_rnd_loss_impl.1} parent=1 // pred_check
      %p565 = pneg %p56
    $region31: #{_rnd_loss_impl.1} parent=1 // pred_check_branch
      %567 = sbr.rel (%p565) target = $region33
    $region32: #{_rnd_loss_impl.1} parent=1 // pred_region
      %v568 = vld [vmem:[#allocation2] sm:$0xff]
      %569 = vst [vmem:[%s3] sm:$0xff] %v568
    $region33: #{_rnd_loss_impl.1} parent=1 // pred_fallthru
      _
    // Predicated region
    $region34: #{_rnd_loss_impl.1} parent=1 // pred_check
      _
    $region35: #{_rnd_loss_impl.1} parent=1 // pred_check_branch
      %571 = sbr.rel (0) target = $region37
    $region36: #{_rnd_loss_impl.1} parent=1 // pred_region
      _
    $region37: #{_rnd_loss_impl.1} parent=1 // pred_fallthru
      _
    // Predicated region
    $region38: #{_rnd_loss_impl.1} parent=1 // pred_check
      _
    $region39: #{_rnd_loss_impl.1} parent=1 // pred_check_branch
      %573 = sbr.rel (0) target = $region41
    $region40: #{_rnd_loss_impl.1} parent=1 // pred_region
      _
    $region41: #{_rnd_loss_impl.1} parent=1 // pred_fallthru
      _
    %574 = vsyncpa [#allocation4], 1
    %575 = vsyncpa [#allocation6], 1

</llo_original>
